<compile_context>
chip_gen: v6e
topology: v6e:2x2x1
jax: 0.10.0
libtpu: 0.0.40
codegen_flags: <defaults>
</compile_context>

<pallas_src>
import functools

import jax
import jax.numpy as jnp
from jax.experimental import pallas as pl
from jax.experimental.pallas import tpu as pltpu

HIDDEN = 768          # fixed by critic_net = Linear(768,192)->Linear(192,48)->Linear(48,1)
OUT_LANES = 128       # lane-dense packed output width
TB = 8                # batch tile (sublane-aligned)
TS_TARGET = 512       # sequence tile: big blocks amortize the ~0.35us/step overhead
NEG_INF = -1e30       # finite "-inf" pad so 0 * pad stays 0 (no NaNs) in entropy


def _round_up(x, m):
    return ((x + m - 1) // m) * m


# --------------------------------------------------------------------------
# Phase 1: DMA-bound streaming sequence-sum (mean-pool numerator).
# grid = (n_split, n_batch_blocks, n_seq_blocks); seq axis is the reduction.
# --------------------------------------------------------------------------
def _mean_pool_kernel(hidden_ref, psum_ref):
    s = pl.program_id(2)

    @pl.when(s == 0)
    def _init():
        psum_ref[...] = jnp.zeros_like(psum_ref)

    # Upcast (bf16 -> f32) inside the reduction; accumulate into the resident
    # f32 output block.  Zero-padded sequence rows contribute nothing.
    part = jnp.sum(hidden_ref[...].astype(jnp.float32), axis=1)      # (TB, 768)
    psum_ref[...] += part[None, :, :]


# --------------------------------------------------------------------------
# Phase 2: tiny per-batch-block finalize (critic matvec + softmax tail).
# --------------------------------------------------------------------------
def _finalize_kernel(psum_ref, logits_ref, gumbel_ref, wf_ref, bf_ref, out_ref,
                     *, padded_p):
    # Combine the per-split partial sequence sums.  1/S is folded into wf, so
    # this is directly the critic matvec on the mean-pooled state.
    pooled_sum = jnp.sum(psum_ref[...], axis=0)                       # (TB, 768)
    critic = jnp.sum(pooled_sum * wf_ref[...], axis=-1,
                     keepdims=True) + bf_ref[...]                     # (TB, 1)

    # Policy branch (lane-dense; padded persona lanes hold -1e30).
    logits = logits_ref[...]                                          # (TB, Ppad)
    m = jnp.max(logits, axis=-1, keepdims=True)
    shifted = logits - m
    e = jnp.exp(shifted)
    z = jnp.sum(e, axis=-1, keepdims=True)
    log_z = jnp.log(z)
    logp_all = shifted - log_z                                        # log-softmax
    # entropy without materializing prob:  H = log z - (sum e*shifted) / z
    entropy = log_z - jnp.sum(e * shifted, axis=-1, keepdims=True) / z

    # Categorical sample via Gumbel-max (noise drawn on the host).
    g = logp_all + gumbel_ref[...]
    gmax = jnp.max(g, axis=-1, keepdims=True)
    lane = jax.lax.broadcasted_iota(jnp.int32, g.shape, 1)
    sample = jnp.min(jnp.where(g >= gmax, lane, padded_p),
                     axis=-1, keepdims=True)                          # (TB, 1) i32
    log_prob = jnp.sum(jnp.where(lane == sample, logp_all, 0.0),
                       axis=-1, keepdims=True)                        # (TB, 1)

    # Pack everything into one lane-dense (TB, 128) output slab.
    out_lane = jax.lax.broadcasted_iota(jnp.int32, out_ref.shape, 1)
    out_ref[...] = jnp.where(out_lane == 0, sample.astype(jnp.float32),
                   jnp.where(out_lane == 1, log_prob,
                   jnp.where(out_lane == 2, entropy,
                   jnp.where(out_lane == 3, critic, 0.0))))


def persona_selector_forward(hidden_states, logits, params, key):
    """hidden_states: (B, S, 768) f32/bf16; logits: (B, P) f32.

    Returns (persona_id (B,) i32, log_prob (B,), entropy (B,), critic (B,1))
    matching PersonaSelector.forward.
    """
    B, S, H = hidden_states.shape
    assert H == HIDDEN
    P = logits.shape[1]
    assert P < (1 << 24), "persona id round-trips through f32; needs P < 2**24"
    logits = logits.astype(jnp.float32)   # keep the softmax path f32 (NEG_INF pad)

    w1, b1, w2, b2, w3, b3 = params
    # critic_net is a purely-linear chain (no activations), so fold it exactly
    # into one matvec; also fold the mean-pool's 1/S into the weight so the
    # kernel never scales the (tb,768) pooled tensor.
    w_fold_t = (((w1 @ w2) @ w3).T * (1.0 / S)).astype(jnp.float32)   # (1, 768)
    b_fold = ((b1 @ w2 + b2) @ w3 + b3).astype(jnp.float32)           # (1, 1)

    # ---- tiling / host-side padding ---------------------------------------
    b_pad = max(TB, _round_up(B, TB))
    n_bblocks = b_pad // TB
    ts = min(TS_TARGET, _round_up(S, 8))
    # Give v7x's second TensorCore work when the batch axis has a single block
    # by splitting the sequence reduction into two parallel halves.
    n_split = 2 if (n_bblocks == 1 and _round_up(S, ts) // ts >= 2) else 1
    s_pad = _round_up(S, n_split * ts)
    n_sblocks = s_pad // (n_split * ts)
    p_pad = max(OUT_LANES, _round_up(P, 128))

    if (b_pad, s_pad) != (B, S):
        hidden_states = jnp.pad(
            hidden_states, ((0, b_pad - B), (0, s_pad - S), (0, 0)))
    if p_pad != P:
        logits = jnp.pad(logits, ((0, 0), (0, p_pad - P)), constant_values=NEG_INF)
    if b_pad != B:
        logits = jnp.pad(logits, ((0, b_pad - B), (0, 0)))
    gumbel = jax.random.gumbel(key, (b_pad, p_pad), dtype=jnp.float32)

    # ---- phase 1: streaming mean-pool numerator ----------------------------
    psums = pl.pallas_call(
        _mean_pool_kernel,
        out_shape=jax.ShapeDtypeStruct((n_split, b_pad, HIDDEN), jnp.float32),
        grid_spec=pltpu.PrefetchScalarGridSpec(
            num_scalar_prefetch=0,
            grid=(n_split, n_bblocks, n_sblocks),
            in_specs=[pl.BlockSpec(
                (TB, ts, HIDDEN),
                lambda sp, b, s: (b, sp * n_sblocks + s, 0))],
            out_specs=pl.BlockSpec((1, TB, HIDDEN), lambda sp, b, s: (sp, b, 0)),
        ),
        compiler_params=pltpu.CompilerParams(
            dimension_semantics=("parallel", "parallel", "arbitrary"),
            vmem_limit_bytes=40 * 1024 * 1024,
        ),
    )(hidden_states)

    # ---- phase 2: finalize (critic + softmax / entropy / sample) ----------
    kernel = functools.partial(_finalize_kernel, padded_p=p_pad)
    packed = pl.pallas_call(
        kernel,
        out_shape=jax.ShapeDtypeStruct((b_pad, OUT_LANES), jnp.float32),
        grid_spec=pltpu.PrefetchScalarGridSpec(
            num_scalar_prefetch=0,
            grid=(n_bblocks,),
            in_specs=[
                pl.BlockSpec((n_split, TB, HIDDEN), lambda b: (0, b, 0)),
                pl.BlockSpec((TB, p_pad), lambda b: (b, 0)),
                pl.BlockSpec((TB, p_pad), lambda b: (b, 0)),
                pl.BlockSpec((1, HIDDEN), lambda b: (0, 0)),
                pl.BlockSpec((1, 1), lambda b: (0, 0)),
            ],
            out_specs=pl.BlockSpec((TB, OUT_LANES), lambda b: (b, 0)),
        ),
        compiler_params=pltpu.CompilerParams(
            dimension_semantics=("parallel",),
        ),
    )(psums, logits, gumbel, w_fold_t, b_fold)

    persona_id = packed[:B, 0].astype(jnp.int32)
    log_prob = packed[:B, 1]
    entropy = packed[:B, 2]
    critic_value = packed[:B, 3:4]
    return persona_id, log_prob, entropy, critic_value


def init_critic_params(key):
    """Deterministic init matching nn.Linear default U(-1/sqrt(fan_in), +)."""
    def linear(k, fan_in, fan_out):
        kw, kb = jax.random.split(k)
        bound = 1.0 / (fan_in ** 0.5)
        w = jax.random.uniform(kw, (fan_in, fan_out), jnp.float32, -bound, bound)
        b = jax.random.uniform(kb, (1, fan_out), jnp.float32, -bound, bound)
        return w, b
    k1, k2, k3 = jax.random.split(key, 3)
    w1, b1 = linear(k1, HIDDEN, 192)
    w2, b2 = linear(k2, 192, 48)
    w3, b3 = linear(k3, 48, 1)
    return w1, b1, w2, b2, w3, b3


if __name__ == "__main__":
    key = jax.random.PRNGKey(0)
    k_hidden, k_logits, k_params, k_sample = jax.random.split(key, 4)

    B, S, P = 2, 8, 16      # batch, seq length, number of personas
    hidden_states = jax.random.normal(
        k_hidden, (B, S, HIDDEN), dtype=jnp.float32).astype(jnp.bfloat16)
    logits = jax.random.normal(k_logits, (B, P), dtype=jnp.float32)
    params = init_critic_params(k_params)

    persona_id, log_prob, entropy, critic_value = persona_selector_forward(
        hidden_states, logits, params, k_sample)
    jax.block_until_ready((persona_id, log_prob, entropy, critic_value))
    print("KERNEL_OK")
</pallas_src>

<mosaic_0001>
module attributes {stable_mosaic.version = 11 : i64} {
  func.func @_mean_pool_kernel(%arg0: i32, %arg1: i32, %arg2: i32, %arg3: memref<8x8x768xbf16, #tpu.memory_space<vmem>>, %arg4: memref<1x8x768xf32, #tpu.memory_space<vmem>>) attributes {dimension_semantics = [#tpu.dimension_semantics<parallel>, #tpu.dimension_semantics<parallel>, #tpu.dimension_semantics<arbitrary>], iteration_bounds = array<i64: 1, 1, 1>, scalar_prefetch = 0 : i64, scratch_operands = 0 : i64, tpu.core_type = #tpu.core_type<tc>, window_params = [{transform_indices = @transform_0, window_bounds = array<i64: 8, 8, 768>}, {transform_indices = @transform_1, window_bounds = array<i64: 1, 8, 768>}]} {
    %c0_i32 = arith.constant 0 : i32
    %0 = arith.cmpi eq, %arg2, %c0_i32 : i32
    %1 = arith.extui %0 : i1 to i32
    %c0_i32_0 = arith.constant 0 : i32
    %2 = arith.cmpi ne, %1, %c0_i32_0 : i32
    scf.if %2 {
      %cst_9 = arith.constant 0.000000e+00 : f32
      %10 = vector.broadcast %cst_9 : f32 to vector<1x8x768xf32>
      %c0_10 = arith.constant 0 : index
      %c0_11 = arith.constant 0 : index
      %c0_12 = arith.constant 0 : index
      %11 = vector.load %arg4[%c0_10, %c0_11, %c0_12] : memref<1x8x768xf32, #tpu.memory_space<vmem>>, vector<1x8x768xf32>
      tpu.vector_store %arg4[%c0_10, %c0_11, %c0_12], %10 {strides = array<i32>} : memref<1x8x768xf32, #tpu.memory_space<vmem>>, vector<1x8x768xf32>,
    } else {
    }
    %c0 = arith.constant 0 : index
    %c0_1 = arith.constant 0 : index
    %c0_2 = arith.constant 0 : index
    %3 = vector.load %arg3[%c0, %c0_1, %c0_2] : memref<8x8x768xbf16, #tpu.memory_space<vmem>>, vector<8x8x768xbf16>
    %4 = arith.extf %3 : vector<8x8x768xbf16> to vector<8x8x768xf32>
    %cst = arith.constant dense<0.000000e+00> : vector<8x768xf32>
    %5 = vector.multi_reduction <add>, %4, %cst [1] : vector<8x8x768xf32> to vector<8x768xf32>
    %c0_3 = arith.constant 0 : index
    %c0_4 = arith.constant 0 : index
    %c0_5 = arith.constant 0 : index
    %6 = vector.load %arg4[%c0_3, %c0_4, %c0_5] : memref<1x8x768xf32, #tpu.memory_space<vmem>>, vector<1x8x768xf32>
    %7 = vector.shape_cast %5 : vector<8x768xf32> to vector<1x8x768xf32>
    %8 = arith.addf %6, %7 : vector<1x8x768xf32>
    %c0_6 = arith.constant 0 : index
    %c0_7 = arith.constant 0 : index
    %c0_8 = arith.constant 0 : index
    %9 = vector.load %arg4[%c0_6, %c0_7, %c0_8] : memref<1x8x768xf32, #tpu.memory_space<vmem>>, vector<1x8x768xf32>
    tpu.vector_store %arg4[%c0_6, %c0_7, %c0_8], %8 {strides = array<i32>} : memref<1x8x768xf32, #tpu.memory_space<vmem>>, vector<1x8x768xf32>,
    return
  }
  func.func @transform_0(%arg0: i32, %arg1: i32, %arg2: i32) -> (i32, i32, i32) {
    %c1_i32 = arith.constant 1 : i32
    %0 = arith.muli %arg0, %c1_i32 : i32
    %1 = arith.addi %0, %arg2 : i32
    %c0_i32 = arith.constant 0 : i32
    %c0_i32_0 = arith.constant 0 : i32
    return %arg1, %1, %c0_i32 : i32, i32, i32
  }
  func.func @transform_1(%arg0: i32, %arg1: i32, %arg2: i32) -> (i32, i32, i32) {
    %c0_i32 = arith.constant 0 : i32
    %c0_i32_0 = arith.constant 0 : i32
    return %arg0, %arg1, %c0_i32 : i32, i32, i32
  }
}

</mosaic_0001>

<llo_original>
// kernel: tpu_custom_call.1
$region0: #{tpu_custom_call.1}
  #allocation0 [shape = 'u32[]', space=smem, size = 0x4, offset = 0x4, fixed_abs, tag = 'smem constant byte address 0x4 - core index']
  #allocation1 [shape = 'u32[144,128]{1,0:T(1,128)}', space=vmem, size = 0x12000, scoped, tag = 'internal scratch']
  %s0 = inlined_call_operand.hbm [shape: bf16[8,8,768], index: 0, kind: input, shape index: {}]
  %s1 = inlined_call_operand.hbm [shape: f32[1,8,768], index: 1, kind: output, shape index: {}]
  %s2 = sld [smem:[#allocation0]]
  $region22: #{tpu_custom_call.1} parent=0
    _
  %s4 = ssub.s32 1, %s2
  %s5 = scalar_select 0, %s4, %s2
  $region1: #{tpu_custom_call.1} parent=0
    #allocation2 [shape = 'u8[98304]{0}', space=vmem, size = 0x18000, scoped, tag = 'input window, operand 0, single buffered']
    #allocation3 [shape = 's32[1]{0}', space=sflag, size = 0x4, scoped, tag = 'scoped memory for tpu_custom_call.1']
    #allocation4 [shape = 's32[1]{0}', space=sflag, size = 0x4, scoped, tag = 'scoped memory for tpu_custom_call.1']
    #allocation5 [shape = 'u8[24576]{0}', space=vmem, size = 0x6000, scoped, tag = 'output window, operand 0, single buffered']
    %6 = vsyncpa [#allocation3], 0
    %7 = vsyncpa [#allocation4], 0
    // Predicated region
    $region2: #{tpu_custom_call.1} parent=1 // pred_check
      _
    $region3: #{tpu_custom_call.1} parent=1 // pred_check_branch
      %9 = sbr.rel (0) target = $region5
    $region4: #{tpu_custom_call.1} parent=1 // pred_region
      %s10 = sadd.s32 0, 0
      %s12 = ssub.s32 3072, 3072
      %13 = vsyncadd [#allocation3], %s12
      %s14 = smul.addr %s10, 6
      %s15 = smul.addr %s14, 64
      %s16 = scalar_lea.hbm %s0, %s15
      %s17 = sshll.u32 [#allocation2], 4
      %s18 = int_to_ptr.vmem [resolvable:$true] %s17
      %23 = dma.hbm_to_vmem [thread:$0]  %s16, 3072, %s18, [#allocation3], 384, 384, 24
    $region5: #{tpu_custom_call.1} parent=1 // pred_fallthru
      _
    // Predicated region
    $region6: #{tpu_custom_call.1} parent=1 // pred_check
      _
    $region7: #{tpu_custom_call.1} parent=1 // pred_check_branch
      %25 = sbr.rel (0) target = $region9
    $region8: #{tpu_custom_call.1} parent=1 // pred_region
      %26 = dma.done [#allocation3], 3072
    $region9: #{tpu_custom_call.1} parent=1 // pred_fallthru
      _
    %s27 = sadd.s32 0, 0
    %p28 = scmp.eq.s32.totalorder 0, 0
    // Predicated region
    $region10: #{tpu_custom_call.1} parent=1 // pred_check
      %p29 = pneg %p28
    $region11: #{tpu_custom_call.1} parent=1 // pred_check_branch
      %31 = sbr.rel (%p29) target = $region13
    $region12: #{tpu_custom_call.1} parent=1 // pred_region
      %32 = vst [vmem:[#allocation5] sm:$0xff] 0.0
      %33 = vst [vmem:[#allocation5 + $0x8] sm:$0xff] 0.0
      %34 = vst [vmem:[#allocation5 + $0x10] sm:$0xff] 0.0
      %35 = vst [vmem:[#allocation5 + $0x18] sm:$0xff] 0.0
      %36 = vst [vmem:[#allocation5 + $0x20] sm:$0xff] 0.0
      %37 = vst [vmem:[#allocation5 + $0x28] sm:$0xff] 0.0
    $region13: #{tpu_custom_call.1} parent=1 // pred_fallthru
      _
    %v38 = vld [vmem:[#allocation2] sm:$0xff]
    %v39 = vld [vmem:[#allocation2 + $0x8] sm:$0xff]
    %v40 = vld [vmem:[#allocation2 + $0x10] sm:$0xff]
    %v41 = vld [vmem:[#allocation2 + $0x18] sm:$0xff]
    %v42 = vld [vmem:[#allocation2 + $0x20] sm:$0xff]
    %v43 = vld [vmem:[#allocation2 + $0x28] sm:$0xff]
    %v44 = vld [vmem:[#allocation2 + $0x30] sm:$0xff]
    %v45 = vld [vmem:[#allocation2 + $0x38] sm:$0xff]
    %v46 = vld [vmem:[#allocation2 + $0x40] sm:$0xff]
    %v47 = vld [vmem:[#allocation2 + $0x48] sm:$0xff]
    %v48 = vld [vmem:[#allocation2 + $0x50] sm:$0xff]
    %v49 = vld [vmem:[#allocation2 + $0x58] sm:$0xff]
    %v50 = vld [vmem:[#allocation2 + $0x60] sm:$0xff]
    %v51 = vld [vmem:[#allocation2 + $0x68] sm:$0xff]
    %v52 = vld [vmem:[#allocation2 + $0x70] sm:$0xff]
    %v53 = vld [vmem:[#allocation2 + $0x78] sm:$0xff]
    %v54 = vld [vmem:[#allocation2 + $0x80] sm:$0xff]
    %v55 = vld [vmem:[#allocation2 + $0x88] sm:$0xff]
    %v56 = vld [vmem:[#allocation2 + $0x90] sm:$0xff]
    %v57 = vld [vmem:[#allocation2 + $0x98] sm:$0xff]
    %v58 = vld [vmem:[#allocation2 + $0xa0] sm:$0xff]
    %v59 = vld [vmem:[#allocation2 + $0xa8] sm:$0xff]
    %v60 = vld [vmem:[#allocation2 + $0xb0] sm:$0xff]
    %v61 = vld [vmem:[#allocation2 + $0xb8] sm:$0xff]
    %v62 = vunpack.c.l.bf16 %v38
    %v63 = vunpack.c.h.bf16 %v38
    %v64 = vunpack.c.l.bf16 %v39
    %v65 = vunpack.c.h.bf16 %v39
    %v66 = vunpack.c.l.bf16 %v40
    %v67 = vunpack.c.h.bf16 %v40
    %v68 = vunpack.c.l.bf16 %v41
    %v69 = vunpack.c.h.bf16 %v41
    %v70 = vunpack.c.l.bf16 %v42
    %v71 = vunpack.c.h.bf16 %v42
    %v72 = vunpack.c.l.bf16 %v43
    %v73 = vunpack.c.h.bf16 %v43
    %v74 = vunpack.c.l.bf16 %v44
    %v75 = vunpack.c.h.bf16 %v44
    %v76 = vunpack.c.l.bf16 %v45
    %v77 = vunpack.c.h.bf16 %v45
    %v78 = vunpack.c.l.bf16 %v46
    %v79 = vunpack.c.h.bf16 %v46
    %v80 = vunpack.c.l.bf16 %v47
    %v81 = vunpack.c.h.bf16 %v47
    %v82 = vunpack.c.l.bf16 %v48
    %v83 = vunpack.c.h.bf16 %v48
    %v84 = vunpack.c.l.bf16 %v49
    %v85 = vunpack.c.h.bf16 %v49
    %v86 = vunpack.c.l.bf16 %v50
    %v87 = vunpack.c.h.bf16 %v50
    %v88 = vunpack.c.l.bf16 %v51
    %v89 = vunpack.c.h.bf16 %v51
    %v90 = vunpack.c.l.bf16 %v52
    %v91 = vunpack.c.h.bf16 %v52
    %v92 = vunpack.c.l.bf16 %v53
    %v93 = vunpack.c.h.bf16 %v53
    %v94 = vunpack.c.l.bf16 %v54
    %v95 = vunpack.c.h.bf16 %v54
    %v96 = vunpack.c.l.bf16 %v55
    %v97 = vunpack.c.h.bf16 %v55
    %v98 = vunpack.c.l.bf16 %v56
    %v99 = vunpack.c.h.bf16 %v56
    %v100 = vunpack.c.l.bf16 %v57
    %v101 = vunpack.c.h.bf16 %v57
    %v102 = vunpack.c.l.bf16 %v58
    %v103 = vunpack.c.h.bf16 %v58
    %v104 = vunpack.c.l.bf16 %v59
    %v105 = vunpack.c.h.bf16 %v59
    %v106 = vunpack.c.l.bf16 %v60
    %v107 = vunpack.c.h.bf16 %v60
    %v108 = vunpack.c.l.bf16 %v61
    %v109 = vunpack.c.h.bf16 %v61
    %v110 = vrot.slane %v62, 4
    %v111 = vadd.f32 %v62, %v110
    %v112 = vrot.slane %v111, 2
    %v113 = vadd.f32 %v111, %v112
    %v114 = vrot.slane %v113, 1
    %v115 = vadd.f32 %v113, %v114
    %v116 = vrot.slane %v63, 4
    %v117 = vadd.f32 %v63, %v116
    %v118 = vrot.slane %v117, 2
    %v119 = vadd.f32 %v117, %v118
    %v120 = vrot.slane %v119, 1
    %v121 = vadd.f32 %v119, %v120
    %v122 = vrot.slane %v64, 4
    %v123 = vadd.f32 %v64, %v122
    %v124 = vrot.slane %v123, 2
    %v125 = vadd.f32 %v123, %v124
    %v126 = vrot.slane %v125, 1
    %v127 = vadd.f32 %v125, %v126
    %v128 = vrot.slane %v65, 4
    %v129 = vadd.f32 %v65, %v128
    %v130 = vrot.slane %v129, 2
    %v131 = vadd.f32 %v129, %v130
    %v132 = vrot.slane %v131, 1
    %v133 = vadd.f32 %v131, %v132
    %v134 = vrot.slane %v66, 4
    %v135 = vadd.f32 %v66, %v134
    %v136 = vrot.slane %v135, 2
    %v137 = vadd.f32 %v135, %v136
    %v138 = vrot.slane %v137, 1
    %v139 = vadd.f32 %v137, %v138
    %v140 = vrot.slane %v67, 4
    %v141 = vadd.f32 %v67, %v140
    %v142 = vrot.slane %v141, 2
    %v143 = vadd.f32 %v141, %v142
    %v144 = vrot.slane %v143, 1
    %v145 = vadd.f32 %v143, %v144
    %v146 = vrot.slane %v68, 4
    %v147 = vadd.f32 %v68, %v146
    %v148 = vrot.slane %v147, 2
    %v149 = vadd.f32 %v147, %v148
    %v150 = vrot.slane %v149, 1
    %v151 = vadd.f32 %v149, %v150
    %v152 = vrot.slane %v69, 4
    %v153 = vadd.f32 %v69, %v152
    %v154 = vrot.slane %v153, 2
    %v155 = vadd.f32 %v153, %v154
    %v156 = vrot.slane %v155, 1
    %v157 = vadd.f32 %v155, %v156
    %v158 = vrot.slane %v70, 4
    %v159 = vadd.f32 %v70, %v158
    %v160 = vrot.slane %v159, 2
    %v161 = vadd.f32 %v159, %v160
    %v162 = vrot.slane %v161, 1
    %v163 = vadd.f32 %v161, %v162
    %v164 = vrot.slane %v71, 4
    %v165 = vadd.f32 %v71, %v164
    %v166 = vrot.slane %v165, 2
    %v167 = vadd.f32 %v165, %v166
    %v168 = vrot.slane %v167, 1
    %v169 = vadd.f32 %v167, %v168
    %v170 = vrot.slane %v72, 4
    %v171 = vadd.f32 %v72, %v170
    %v172 = vrot.slane %v171, 2
    %v173 = vadd.f32 %v171, %v172
    %v174 = vrot.slane %v173, 1
    %v175 = vadd.f32 %v173, %v174
    %v176 = vrot.slane %v73, 4
    %v177 = vadd.f32 %v73, %v176
    %v178 = vrot.slane %v177, 2
    %v179 = vadd.f32 %v177, %v178
    %v180 = vrot.slane %v179, 1
    %v181 = vadd.f32 %v179, %v180
    %v182 = vrot.slane %v74, 4
    %v183 = vadd.f32 %v74, %v182
    %v184 = vrot.slane %v183, 2
    %v185 = vadd.f32 %v183, %v184
    %v186 = vrot.slane %v185, 1
    %v187 = vadd.f32 %v185, %v186
    %v188 = vrot.slane %v75, 4
    %v189 = vadd.f32 %v75, %v188
    %v190 = vrot.slane %v189, 2
    %v191 = vadd.f32 %v189, %v190
    %v192 = vrot.slane %v191, 1
    %v193 = vadd.f32 %v191, %v192
    %v194 = vrot.slane %v76, 4
    %v195 = vadd.f32 %v76, %v194
    %v196 = vrot.slane %v195, 2
    %v197 = vadd.f32 %v195, %v196
    %v198 = vrot.slane %v197, 1
    %v199 = vadd.f32 %v197, %v198
    %v200 = vrot.slane %v77, 4
    %v201 = vadd.f32 %v77, %v200
    %v202 = vrot.slane %v201, 2
    %v203 = vadd.f32 %v201, %v202
    %v204 = vrot.slane %v203, 1
    %v205 = vadd.f32 %v203, %v204
    %v206 = vrot.slane %v78, 4
    %v207 = vadd.f32 %v78, %v206
    %v208 = vrot.slane %v207, 2
    %v209 = vadd.f32 %v207, %v208
    %v210 = vrot.slane %v209, 1
    %v211 = vadd.f32 %v209, %v210
    %v212 = vrot.slane %v79, 4
    %v213 = vadd.f32 %v79, %v212
    %v214 = vrot.slane %v213, 2
    %v215 = vadd.f32 %v213, %v214
    %v216 = vrot.slane %v215, 1
    %v217 = vadd.f32 %v215, %v216
    %v218 = vrot.slane %v80, 4
    %v219 = vadd.f32 %v80, %v218
    %v220 = vrot.slane %v219, 2
    %v221 = vadd.f32 %v219, %v220
    %v222 = vrot.slane %v221, 1
    %v223 = vadd.f32 %v221, %v222
    %v224 = vrot.slane %v81, 4
    %v225 = vadd.f32 %v81, %v224
    %v226 = vrot.slane %v225, 2
    %v227 = vadd.f32 %v225, %v226
    %v228 = vrot.slane %v227, 1
    %v229 = vadd.f32 %v227, %v228
    %v230 = vrot.slane %v82, 4
    %v231 = vadd.f32 %v82, %v230
    %v232 = vrot.slane %v231, 2
    %v233 = vadd.f32 %v231, %v232
    %v234 = vrot.slane %v233, 1
    %v235 = vadd.f32 %v233, %v234
    %v236 = vrot.slane %v83, 4
    %v237 = vadd.f32 %v83, %v236
    %v238 = vrot.slane %v237, 2
    %v239 = vadd.f32 %v237, %v238
    %v240 = vrot.slane %v239, 1
    %v241 = vadd.f32 %v239, %v240
    %v242 = vrot.slane %v84, 4
    %v243 = vadd.f32 %v84, %v242
    %v244 = vrot.slane %v243, 2
    %v245 = vadd.f32 %v243, %v244
    %v246 = vrot.slane %v245, 1
    %v247 = vadd.f32 %v245, %v246
    %v248 = vrot.slane %v85, 4
    %v249 = vadd.f32 %v85, %v248
    %v250 = vrot.slane %v249, 2
    %v251 = vadd.f32 %v249, %v250
    %v252 = vrot.slane %v251, 1
    %v253 = vadd.f32 %v251, %v252
    %v254 = vrot.slane %v86, 4
    %v255 = vadd.f32 %v86, %v254
    %v256 = vrot.slane %v255, 2
    %v257 = vadd.f32 %v255, %v256
    %v258 = vrot.slane %v257, 1
    %v259 = vadd.f32 %v257, %v258
    %v260 = vrot.slane %v87, 4
    %v261 = vadd.f32 %v87, %v260
    %v262 = vrot.slane %v261, 2
    %v263 = vadd.f32 %v261, %v262
    %v264 = vrot.slane %v263, 1
    %v265 = vadd.f32 %v263, %v264
    %v266 = vrot.slane %v88, 4
    %v267 = vadd.f32 %v88, %v266
    %v268 = vrot.slane %v267, 2
    %v269 = vadd.f32 %v267, %v268
    %v270 = vrot.slane %v269, 1
    %v271 = vadd.f32 %v269, %v270
    %v272 = vrot.slane %v89, 4
    %v273 = vadd.f32 %v89, %v272
    %v274 = vrot.slane %v273, 2
    %v275 = vadd.f32 %v273, %v274
    %v276 = vrot.slane %v275, 1
    %v277 = vadd.f32 %v275, %v276
    %v278 = vrot.slane %v90, 4
    %v279 = vadd.f32 %v90, %v278
    %v280 = vrot.slane %v279, 2
    %v281 = vadd.f32 %v279, %v280
    %v282 = vrot.slane %v281, 1
    %v283 = vadd.f32 %v281, %v282
    %v284 = vrot.slane %v91, 4
    %v285 = vadd.f32 %v91, %v284
    %v286 = vrot.slane %v285, 2
    %v287 = vadd.f32 %v285, %v286
    %v288 = vrot.slane %v287, 1
    %v289 = vadd.f32 %v287, %v288
    %v290 = vrot.slane %v92, 4
    %v291 = vadd.f32 %v92, %v290
    %v292 = vrot.slane %v291, 2
    %v293 = vadd.f32 %v291, %v292
    %v294 = vrot.slane %v293, 1
    %v295 = vadd.f32 %v293, %v294
    %v296 = vrot.slane %v93, 4
    %v297 = vadd.f32 %v93, %v296
    %v298 = vrot.slane %v297, 2
    %v299 = vadd.f32 %v297, %v298
    %v300 = vrot.slane %v299, 1
    %v301 = vadd.f32 %v299, %v300
    %v302 = vrot.slane %v94, 4
    %v303 = vadd.f32 %v94, %v302
    %v304 = vrot.slane %v303, 2
    %v305 = vadd.f32 %v303, %v304
    %v306 = vrot.slane %v305, 1
    %v307 = vadd.f32 %v305, %v306
    %v308 = vrot.slane %v95, 4
    %v309 = vadd.f32 %v95, %v308
    %v310 = vrot.slane %v309, 2
    %v311 = vadd.f32 %v309, %v310
    %v312 = vrot.slane %v311, 1
    %v313 = vadd.f32 %v311, %v312
    %v314 = vrot.slane %v96, 4
    %v315 = vadd.f32 %v96, %v314
    %v316 = vrot.slane %v315, 2
    %v317 = vadd.f32 %v315, %v316
    %v318 = vrot.slane %v317, 1
    %v319 = vadd.f32 %v317, %v318
    %v320 = vrot.slane %v97, 4
    %v321 = vadd.f32 %v97, %v320
    %v322 = vrot.slane %v321, 2
    %v323 = vadd.f32 %v321, %v322
    %v324 = vrot.slane %v323, 1
    %v325 = vadd.f32 %v323, %v324
    %v326 = vrot.slane %v98, 4
    %v327 = vadd.f32 %v98, %v326
    %v328 = vrot.slane %v327, 2
    %v329 = vadd.f32 %v327, %v328
    %v330 = vrot.slane %v329, 1
    %v331 = vadd.f32 %v329, %v330
    %v332 = vrot.slane %v99, 4
    %v333 = vadd.f32 %v99, %v332
    %v334 = vrot.slane %v333, 2
    %v335 = vadd.f32 %v333, %v334
    %v336 = vrot.slane %v335, 1
    %v337 = vadd.f32 %v335, %v336
    %v338 = vrot.slane %v100, 4
    %v339 = vadd.f32 %v100, %v338
    %v340 = vrot.slane %v339, 2
    %v341 = vadd.f32 %v339, %v340
    %v342 = vrot.slane %v341, 1
    %v343 = vadd.f32 %v341, %v342
    %v344 = vrot.slane %v101, 4
    %v345 = vadd.f32 %v101, %v344
    %v346 = vrot.slane %v345, 2
    %v347 = vadd.f32 %v345, %v346
    %v348 = vrot.slane %v347, 1
    %v349 = vadd.f32 %v347, %v348
    %v350 = vrot.slane %v102, 4
    %v351 = vadd.f32 %v102, %v350
    %v352 = vrot.slane %v351, 2
    %v353 = vadd.f32 %v351, %v352
    %v354 = vrot.slane %v353, 1
    %v355 = vadd.f32 %v353, %v354
    %v356 = vrot.slane %v103, 4
    %v357 = vadd.f32 %v103, %v356
    %v358 = vrot.slane %v357, 2
    %v359 = vadd.f32 %v357, %v358
    %v360 = vrot.slane %v359, 1
    %v361 = vadd.f32 %v359, %v360
    %v362 = vrot.slane %v104, 4
    %v363 = vadd.f32 %v104, %v362
    %v364 = vrot.slane %v363, 2
    %v365 = vadd.f32 %v363, %v364
    %v366 = vrot.slane %v365, 1
    %v367 = vadd.f32 %v365, %v366
    %v368 = vrot.slane %v105, 4
    %v369 = vadd.f32 %v105, %v368
    %v370 = vrot.slane %v369, 2
    %v371 = vadd.f32 %v369, %v370
    %v372 = vrot.slane %v371, 1
    %v373 = vadd.f32 %v371, %v372
    %v374 = vrot.slane %v106, 4
    %v375 = vadd.f32 %v106, %v374
    %v376 = vrot.slane %v375, 2
    %v377 = vadd.f32 %v375, %v376
    %v378 = vrot.slane %v377, 1
    %v379 = vadd.f32 %v377, %v378
    %v380 = vrot.slane %v107, 4
    %v381 = vadd.f32 %v107, %v380
    %v382 = vrot.slane %v381, 2
    %v383 = vadd.f32 %v381, %v382
    %v384 = vrot.slane %v383, 1
    %v385 = vadd.f32 %v383, %v384
    %v386 = vrot.slane %v108, 4
    %v387 = vadd.f32 %v108, %v386
    %v388 = vrot.slane %v387, 2
    %v389 = vadd.f32 %v387, %v388
    %v390 = vrot.slane %v389, 1
    %v391 = vadd.f32 %v389, %v390
    %v392 = vrot.slane %v109, 4
    %v393 = vadd.f32 %v109, %v392
    %v394 = vrot.slane %v393, 2
    %v395 = vadd.f32 %v393, %v394
    %v396 = vrot.slane %v395, 1
    %v397 = vadd.f32 %v395, %v396
    %v398 = vld [vmem:[#allocation5] sm:$0xff]
    %v399 = vld [vmem:[#allocation5 + $0x8] sm:$0xff]
    %v400 = vld [vmem:[#allocation5 + $0x10] sm:$0xff]
    %v401 = vld [vmem:[#allocation5 + $0x18] sm:$0xff]
    %v402 = vld [vmem:[#allocation5 + $0x20] sm:$0xff]
    %v403 = vld [vmem:[#allocation5 + $0x28] sm:$0xff]
    %vm452 = vcmask 1041409
    %v453 = vsel %vm452, %v151, %v115
    %vm454 = vcmask 1042434
    %v455 = vsel %vm454, %v187, %v453
    %vm456 = vcmask 1043459
    %v457 = vsel %vm456, %v223, %v455
    %vm458 = vcmask 1044484
    %v459 = vsel %vm458, %v259, %v457
    %vm460 = vcmask 1045509
    %v461 = vsel %vm460, %v295, %v459
    %vm462 = vcmask 1046534
    %v463 = vsel %vm462, %v331, %v461
    %vm464 = vcmask 1047559
    %v465 = vsel %vm464, %v367, %v463
    %v466 = vsel %vm452, %v157, %v121
    %v467 = vsel %vm454, %v193, %v466
    %v468 = vsel %vm456, %v229, %v467
    %v469 = vsel %vm458, %v265, %v468
    %v470 = vsel %vm460, %v301, %v469
    %v471 = vsel %vm462, %v337, %v470
    %v472 = vsel %vm464, %v373, %v471
    %v473 = vsel %vm452, %v163, %v127
    %v474 = vsel %vm454, %v199, %v473
    %v475 = vsel %vm456, %v235, %v474
    %v476 = vsel %vm458, %v271, %v475
    %v477 = vsel %vm460, %v307, %v476
    %v478 = vsel %vm462, %v343, %v477
    %v479 = vsel %vm464, %v379, %v478
    %v480 = vsel %vm452, %v169, %v133
    %v481 = vsel %vm454, %v205, %v480
    %v482 = vsel %vm456, %v241, %v481
    %v483 = vsel %vm458, %v277, %v482
    %v484 = vsel %vm460, %v313, %v483
    %v485 = vsel %vm462, %v349, %v484
    %v486 = vsel %vm464, %v385, %v485
    %v487 = vsel %vm452, %v175, %v139
    %v488 = vsel %vm454, %v211, %v487
    %v489 = vsel %vm456, %v247, %v488
    %v490 = vsel %vm458, %v283, %v489
    %v491 = vsel %vm460, %v319, %v490
    %v492 = vsel %vm462, %v355, %v491
    %v493 = vsel %vm464, %v391, %v492
    %v494 = vsel %vm452, %v181, %v145
    %v495 = vsel %vm454, %v217, %v494
    %v496 = vsel %vm456, %v253, %v495
    %v497 = vsel %vm458, %v289, %v496
    %v498 = vsel %vm460, %v325, %v497
    %v499 = vsel %vm462, %v361, %v498
    %v500 = vsel %vm464, %v397, %v499
    %v507 = vadd.f32 %v398, %v465
    %v508 = vadd.f32 %v399, %v472
    %v509 = vadd.f32 %v400, %v479
    %v510 = vadd.f32 %v401, %v486
    %v511 = vadd.f32 %v402, %v493
    %v512 = vadd.f32 %v403, %v500
    %513 = vst [vmem:[#allocation5] sm:$0xff] %v507
    %514 = vst [vmem:[#allocation5 + $0x8] sm:$0xff] %v508
    %515 = vst [vmem:[#allocation5 + $0x10] sm:$0xff] %v509
    %516 = vst [vmem:[#allocation5 + $0x18] sm:$0xff] %v510
    %517 = vst [vmem:[#allocation5 + $0x20] sm:$0xff] %v511
    %518 = vst [vmem:[#allocation5 + $0x28] sm:$0xff] %v512
    // Predicated region
    $region14: #{tpu_custom_call.1} parent=1 // pred_check
      _
    $region15: #{tpu_custom_call.1} parent=1 // pred_check_branch
      %520 = sbr.rel (0) target = $region17
    $region16: #{tpu_custom_call.1} parent=1 // pred_region
      %s522 = ssub.s32 768, 768
      %523 = vsyncadd [#allocation4], %s522
      %s525 = sshll.u32 [#allocation5], 4
      %s526 = int_to_ptr.vmem [resolvable:$true] %s525
      %528 = dma.vmem_to_hbm [thread:$0]  %s526, 768, %s1, [#allocation4]
    $region17: #{tpu_custom_call.1} parent=1 // pred_fallthru
      _
    // Predicated region
    $region18: #{tpu_custom_call.1} parent=1 // pred_check
      _
    $region19: #{tpu_custom_call.1} parent=1 // pred_check_branch
      %530 = sbr.rel (0) target = $region21
    $region20: #{tpu_custom_call.1} parent=1 // pred_region
      %531 = dma.done [#allocation4], 768
    $region21: #{tpu_custom_call.1} parent=1 // pred_fallthru
      _
    %532 = vsyncpa [#allocation3], 1
    %533 = vsyncpa [#allocation4], 1

</llo_original>
